<compile_context>
chip_gen: v7x
topology: tpu7x:2x2x1
jax: 0.10.0
libtpu: 0.0.40
codegen_flags: <defaults>
</compile_context>

<pallas_src>
import math

import jax
import jax.numpy as jnp
from jax.experimental import pallas as pl
from jax.experimental.pallas import tpu as pltpu


def _round_up(a, b):
    return (a + b - 1) // b * b


# ----------------------------------------------------------------------------
# Kernel bodies
# ----------------------------------------------------------------------------
def _decoder_resident_kernel(x_ref, w1_ref, b1_ref, w2_ref, b2_ref, o_ref):
    # y = GELU(x @ W1 + b1) @ W2 + b2  -- weights fully VMEM-resident.
    h = jnp.dot(x_ref[...], w1_ref[...], preferred_element_type=jnp.float32)
    h = h + b1_ref[...]
    # TODO(synk): PyTorch nn.GELU() defaults to the exact erf form; tanh-approx
    # (EUP tanh) is used since erf lowering in Mosaic is not guaranteed.
    h = jax.nn.gelu(h, approximate=True)
    y = jnp.dot(h.astype(w2_ref.dtype), w2_ref[...],
                preferred_element_type=jnp.float32)
    o_ref[...] = (y + b2_ref[...]).astype(o_ref.dtype)


def _decoder_ktile_kernel(x_ref, w1_ref, b1_ref, w2_ref, b2_ref, o_ref, acc_ref):
    # 4H-contraction-tiled path: W1 tiled by columns, W2 by rows. GELU is
    # elementwise along 4H so it can be applied per chunk before the 2nd dot.
    k = pl.program_id(1)

    @pl.when(k == 0)
    def _():
        acc_ref[...] = jnp.zeros_like(acc_ref)

    h = jnp.dot(x_ref[...], w1_ref[...], preferred_element_type=jnp.float32)
    h = jax.nn.gelu(h + b1_ref[...], approximate=True)
    acc_ref[...] += jnp.dot(h.astype(w2_ref.dtype), w2_ref[...],
                            preferred_element_type=jnp.float32)

    @pl.when(k == pl.num_programs(1) - 1)
    def _():
        o_ref[...] = (acc_ref[...] + b2_ref[...]).astype(o_ref.dtype)


# ----------------------------------------------------------------------------
# Wrapper
# ----------------------------------------------------------------------------
def _const_block_spec(shape, index_map):
    """BlockSpec for a grid-invariant (resident) operand: single-buffered."""
    try:
        return pl.BlockSpec(shape, index_map, pipeline_mode=pl.Buffered(1))
    except Exception:  # older jax without pipeline_mode: fall back gracefully
        return pl.BlockSpec(shape, index_map)


def _pick_row_tile(M, sublane):
    if M <= 256:
        return _round_up(max(M, 1), sublane)
    return 256  # ~>=85% of HBM roofline; multiple of 8 and 16


def _vmem_limit_bytes(tm, H, kblk, Npad, itemsize, ktiled):
    wbuf = (H * kblk + kblk * Npad) * itemsize * (2 if ktiled else 1)
    bbuf = 2 * (kblk + Npad) * 4
    xbuf = 2 * tm * H * itemsize
    obuf = 2 * tm * Npad * 4
    inter = tm * kblk * 4 + tm * Npad * 4
    need = wbuf + bbuf + xbuf + obuf + inter + (4 << 20)        # + headroom
    return int(min(max(need, 32 << 20), 56 << 20))              # <64MiB (v7x)


def seismic_decoder(x, params, *, matmul_dtype=jnp.bfloat16, k_tile=None):
    """x: (..., hidden) -> (..., out_channel). One fused pallas_call.

    matmul_dtype: dtype of the MXU operands (None = keep x.dtype, f32 parity).
    k_tile:       force the 4H-contraction-tiled path with this chunk size.
    """
    w1, b1 = params["l1"]["w"], params["l1"]["b"]
    w2, b2 = params["l2"]["w"], params["l2"]["b"]

    *lead, H = x.shape
    H4 = w1.shape[1]
    N = w2.shape[1]
    M = int(math.prod(lead)) if lead else 1

    out_dtype = x.dtype
    mm_dtype = jnp.dtype(matmul_dtype) if matmul_dtype is not None else jnp.dtype(x.dtype)
    itemsize = mm_dtype.itemsize
    sublane = max(8, 32 // itemsize)          # 8 for f32, 16 for bf16

    # --- row tiling / padding ------------------------------------------------
    tm = _pick_row_tile(M, sublane)
    Mpad = _round_up(M, tm)

    # --- lane-dense output: pad out_channel to a multiple of 128 -------------
    Npad = _round_up(max(N, 1), 128)

    x2 = x.reshape(M, H)
    if Mpad != M:
        x2 = jnp.pad(x2, ((0, Mpad - M), (0, 0)))
    x2 = x2.astype(mm_dtype)

    # Cast weights OUTSIDE the kernel (halves HBM DMA bytes & VMEM residency).
    w1c = w1.astype(mm_dtype)
    w2c, b2c = w2, b2
    if Npad != N:
        w2c = jnp.pad(w2c, ((0, 0), (0, Npad - N)))
        b2c = jnp.pad(b2c, ((0, Npad - N),))
    w2c = w2c.astype(mm_dtype)
    b1c = b1.reshape(1, H4).astype(jnp.float32)
    b2c = b2c.reshape(1, Npad).astype(jnp.float32)

    # --- choose resident-weights vs 4H-contraction-tiled path ----------------
    weight_bytes = (H * H4 + H4 * Npad) * itemsize
    if k_tile is None and weight_bytes > (24 << 20):
        k_tile = 512                            # bound VMEM on v7x (64 MiB)
    if k_tile is not None and H4 % 128 != 0:
        k_tile = None                           # cannot lane-tile 4H cleanly
    if k_tile is not None:
        k_tile = max(128, (min(int(k_tile), H4) // 128) * 128)
        while H4 % k_tile:
            k_tile -= 128
        if k_tile >= H4:
            k_tile = None                       # one chunk == resident path

    grid_rows = Mpad // tm
    out_isize = jnp.dtype(out_dtype).itemsize
    cost = pl.CostEstimate(
        flops=2 * M * H * H4 + 2 * M * H4 * N,
        transcendentals=M * H4,
        bytes_accessed=int(x2.nbytes + w1c.nbytes + w2c.nbytes + b1c.nbytes
                           + b2c.nbytes + Mpad * Npad * out_isize),
    )

    if k_tile is None:
        out = pl.pallas_call(
            _decoder_resident_kernel,
            out_shape=jax.ShapeDtypeStruct((Mpad, Npad), out_dtype),
            grid=(grid_rows,),
            in_specs=[
                pl.BlockSpec((tm, H), lambda i: (i, 0)),          # x rows
                _const_block_spec((H, H4), lambda i: (0, 0)),     # W1 (resident)
                _const_block_spec((1, H4), lambda i: (0, 0)),     # b1
                _const_block_spec((H4, Npad), lambda i: (0, 0)),  # W2 (resident)
                _const_block_spec((1, Npad), lambda i: (0, 0)),   # b2
            ],
            out_specs=pl.BlockSpec((tm, Npad), lambda i: (i, 0)),
            compiler_params=pltpu.CompilerParams(
                dimension_semantics=("parallel",),
                vmem_limit_bytes=_vmem_limit_bytes(tm, H, H4, Npad, itemsize, False),
            ),
            cost_estimate=cost,
        )(x2, w1c, b1c, w2c, b2c)
    else:
        out = pl.pallas_call(
            _decoder_ktile_kernel,
            out_shape=jax.ShapeDtypeStruct((Mpad, Npad), out_dtype),
            grid=(grid_rows, H4 // k_tile),
            in_specs=[
                pl.BlockSpec((tm, H), lambda i, k: (i, 0)),        # x rows
                pl.BlockSpec((H, k_tile), lambda i, k: (0, k)),    # W1 col chunk
                pl.BlockSpec((1, k_tile), lambda i, k: (0, k)),    # b1 chunk
                pl.BlockSpec((k_tile, Npad), lambda i, k: (k, 0)), # W2 row chunk
                pl.BlockSpec((1, Npad), lambda i, k: (0, 0)),      # b2
            ],
            out_specs=pl.BlockSpec((tm, Npad), lambda i, k: (i, 0)),
            scratch_shapes=[pltpu.VMEM((tm, Npad), jnp.float32)],
            compiler_params=pltpu.CompilerParams(
                dimension_semantics=("parallel", "arbitrary"),
                vmem_limit_bytes=_vmem_limit_bytes(tm, H, k_tile, Npad, itemsize, True),
            ),
            cost_estimate=cost,
        )(x2, w1c, b1c, w2c, b2c)

    return out[:M, :N].reshape(*lead, N)


# ----------------------------------------------------------------------------
# Deterministic parameter init (nn.Linear layout: y = x @ W + b)
# ----------------------------------------------------------------------------
def init_linear(key, fan_in, fan_out):
    kw, kb = jax.random.split(key)
    return {"w": 0.02 * jax.random.normal(kw, (fan_in, fan_out), jnp.float32),
            "b": 0.02 * jax.random.normal(kb, (fan_out,), jnp.float32)}


def init_params(key, hidden, out_channel):
    k1, k2 = jax.random.split(key)
    return {"l1": init_linear(k1, hidden, hidden * 4),
            "l2": init_linear(k2, hidden * 4, out_channel)}


# ----------------------------------------------------------------------------
def _reference(x, params, matmul_dtype=None):
    """Plain-JAX reference with identical math (f32 accumulation, f32 GELU)."""
    w1, b1 = params["l1"]["w"], params["l1"]["b"]
    w2, b2 = params["l2"]["w"], params["l2"]["b"]
    xd = x if matmul_dtype is None else x.astype(matmul_dtype)
    w1d = w1 if matmul_dtype is None else w1.astype(matmul_dtype)
    h = jnp.dot(xd, w1d, preferred_element_type=jnp.float32) + b1
    h = jax.nn.gelu(h, approximate=True)
    hd = h if matmul_dtype is None else h.astype(matmul_dtype)
    w2d = w2 if matmul_dtype is None else w2.astype(matmul_dtype)
    return jnp.dot(hd, w2d, preferred_element_type=jnp.float32) + b2


if __name__ == "__main__":
    B, S, HIDDEN, OUT_CH = 2, 8, 32, 4

    key = jax.random.PRNGKey(0)
    kp, kx = jax.random.split(key)
    params = init_params(kp, HIDDEN, OUT_CH)
    x = jax.random.normal(kx, (B, S, HIDDEN), jnp.float32)

    # 1) Default path: bf16 MXU operands, f32 accumulation / bias / GELU.
    y = seismic_decoder(x, params)
    jax.block_until_ready(y)
    assert y.shape == (B, S, OUT_CH)
    assert bool(jnp.all(jnp.isfinite(y)))
    y_ref = _reference(x, params, matmul_dtype=jnp.bfloat16)
    assert bool(jnp.allclose(y, y_ref, atol=5e-3, rtol=5e-3))

    # 2) f32 parity mode against the plain-JAX reference.
    y32 = seismic_decoder(x, params, matmul_dtype=None)
    jax.block_until_ready(y32)
    assert bool(jnp.allclose(y32, _reference(x, params), atol=1e-5, rtol=1e-5))

    # 3) 4H-contraction-tiled path (large-H / v7x structure), with a ragged row
    #    count to exercise the row padding logic.
    B2, S2, H2, OUT2 = 3, 5, 64, 4
    kp2, kx2 = jax.random.split(jax.random.PRNGKey(1))
    params2 = init_params(kp2, H2, OUT2)
    x2 = jax.random.normal(kx2, (B2, S2, H2), jnp.float32)
    y2 = seismic_decoder(x2, params2, k_tile=128)
    jax.block_until_ready(y2)
    assert y2.shape == (B2, S2, OUT2)
    y2_ref = _reference(x2, params2, matmul_dtype=jnp.bfloat16)
    assert bool(jnp.allclose(y2, y2_ref, atol=5e-3, rtol=5e-3))

    print("KERNEL_OK")
</pallas_src>

<mosaic_0001>
module attributes {stable_mosaic.version = 11 : i64} {
  func.func @_decoder_resident_kernel(%arg0: i32, %arg1: memref<16x32xbf16, #tpu.memory_space<vmem>>, %arg2: memref<32x128xbf16, #tpu.memory_space<vmem>>, %arg3: memref<1x128xf32, #tpu.memory_space<vmem>>, %arg4: memref<128x128xbf16, #tpu.memory_space<vmem>>, %arg5: memref<1x128xf32, #tpu.memory_space<vmem>>, %arg6: memref<16x128xf32, #tpu.memory_space<vmem>>) attributes {dimension_semantics = [#tpu.dimension_semantics<parallel>], iteration_bounds = array<i64: 1>, scalar_prefetch = 0 : i64, scratch_operands = 0 : i64, tpu.core_type = #tpu.core_type<tc>, window_params = [{transform_indices = @transform_0, window_bounds = array<i64: 16, 32>}, {pipeline_mode = #tpu.pipeline_mode<synchronous>, transform_indices = @transform_1, window_bounds = array<i64: 32, 128>}, {pipeline_mode = #tpu.pipeline_mode<synchronous>, transform_indices = @transform_2, window_bounds = array<i64: 1, 128>}, {pipeline_mode = #tpu.pipeline_mode<synchronous>, transform_indices = @transform_3, window_bounds = array<i64: 128, 128>}, {pipeline_mode = #tpu.pipeline_mode<synchronous>, transform_indices = @transform_4, window_bounds = array<i64: 1, 128>}, {transform_indices = @transform_5, window_bounds = array<i64: 16, 128>}]} {
    %c0 = arith.constant 0 : index
    %c0_0 = arith.constant 0 : index
    %0 = vector.load %arg1[%c0, %c0_0] : memref<16x32xbf16, #tpu.memory_space<vmem>>, vector<16x32xbf16>
    %c0_1 = arith.constant 0 : index
    %c0_2 = arith.constant 0 : index
    %1 = vector.load %arg2[%c0_1, %c0_2] : memref<32x128xbf16, #tpu.memory_space<vmem>>, vector<32x128xbf16>
    %cst = arith.constant dense<0.000000e+00> : vector<16x128xf32>
    %2 = tpu.matmul %0, %1, %cst {dimension_numbers = #tpu.dot_dimension_numbers<[1], [0], [0], [1], [0, 0, 1, 1], [], []>} : vector<16x32xbf16>, vector<32x128xbf16>, vector<16x128xf32> -> vector<16x128xf32>
    %c0_3 = arith.constant 0 : index
    %c0_4 = arith.constant 0 : index
    %3 = vector.load %arg3[%c0_3, %c0_4] : memref<1x128xf32, #tpu.memory_space<vmem>>, vector<1x128xf32>
    %4 = vector.broadcast %3 : vector<1x128xf32> to vector<16x128xf32>
    %5 = arith.addf %2, %4 : vector<16x128xf32>
    %6 = arith.mulf %5, %5 : vector<16x128xf32>
    %7 = arith.mulf %5, %6 : vector<16x128xf32>
    %cst_5 = arith.constant 4.471500e-02 : f32
    %8 = vector.broadcast %cst_5 : f32 to vector<16x128xf32>
    %9 = arith.mulf %8, %7 : vector<16x128xf32>
    %10 = arith.addf %5, %9 : vector<16x128xf32>
    %cst_6 = arith.constant 0.797884583 : f32
    %11 = vector.broadcast %cst_6 : f32 to vector<16x128xf32>
    %12 = arith.mulf %11, %10 : vector<16x128xf32>
    %13 = math.tanh %12 : vector<16x128xf32>
    %cst_7 = arith.constant 1.000000e+00 : f32
    %14 = vector.broadcast %cst_7 : f32 to vector<16x128xf32>
    %15 = arith.addf %14, %13 : vector<16x128xf32>
    %cst_8 = arith.constant 5.000000e-01 : f32
    %16 = vector.broadcast %cst_8 : f32 to vector<16x128xf32>
    %17 = arith.mulf %16, %15 : vector<16x128xf32>
    %18 = arith.mulf %5, %17 : vector<16x128xf32>
    %19 = arith.truncf %18 : vector<16x128xf32> to vector<16x128xbf16>
    %c0_9 = arith.constant 0 : index
    %c0_10 = arith.constant 0 : index
    %20 = vector.load %arg4[%c0_9, %c0_10] : memref<128x128xbf16, #tpu.memory_space<vmem>>, vector<128x128xbf16>
    %cst_11 = arith.constant dense<0.000000e+00> : vector<16x128xf32>
    %21 = tpu.matmul %19, %20, %cst_11 {dimension_numbers = #tpu.dot_dimension_numbers<[1], [0], [0], [1], [0, 0, 1, 1], [], []>} : vector<16x128xbf16>, vector<128x128xbf16>, vector<16x128xf32> -> vector<16x128xf32>
    %c0_12 = arith.constant 0 : index
    %c0_13 = arith.constant 0 : index
    %22 = vector.load %arg5[%c0_12, %c0_13] : memref<1x128xf32, #tpu.memory_space<vmem>>, vector<1x128xf32>
    %23 = vector.broadcast %22 : vector<1x128xf32> to vector<16x128xf32>
    %24 = arith.addf %21, %23 : vector<16x128xf32>
    %c0_14 = arith.constant 0 : index
    %c0_15 = arith.constant 0 : index
    %25 = vector.load %arg6[%c0_14, %c0_15] : memref<16x128xf32, #tpu.memory_space<vmem>>, vector<16x128xf32>
    tpu.vector_store %arg6[%c0_14, %c0_15], %24 {strides = array<i32>} : memref<16x128xf32, #tpu.memory_space<vmem>>, vector<16x128xf32>,
    return
  }
  func.func @transform_0(%arg0: i32) -> (i32, i32) {
    %c0_i32 = arith.constant 0 : i32
    %c0_i32_0 = arith.constant 0 : i32
    return %arg0, %c0_i32 : i32, i32
  }
  func.func @transform_1(%arg0: i32) -> (i32, i32) {
    %c0_i32 = arith.constant 0 : i32
    %c0_i32_0 = arith.constant 0 : i32
    %c0_i32_1 = arith.constant 0 : i32
    return %c0_i32, %c0_i32_0 : i32, i32
  }
  func.func @transform_2(%arg0: i32) -> (i32, i32) {
    %c0_i32 = arith.constant 0 : i32
    %c0_i32_0 = arith.constant 0 : i32
    %c0_i32_1 = arith.constant 0 : i32
    return %c0_i32, %c0_i32_0 : i32, i32
  }
  func.func @transform_3(%arg0: i32) -> (i32, i32) {
    %c0_i32 = arith.constant 0 : i32
    %c0_i32_0 = arith.constant 0 : i32
    %c0_i32_1 = arith.constant 0 : i32
    return %c0_i32, %c0_i32_0 : i32, i32
  }
  func.func @transform_4(%arg0: i32) -> (i32, i32) {
    %c0_i32 = arith.constant 0 : i32
    %c0_i32_0 = arith.constant 0 : i32
    %c0_i32_1 = arith.constant 0 : i32
    return %c0_i32, %c0_i32_0 : i32, i32
  }
  func.func @transform_5(%arg0: i32) -> (i32, i32) {
    %c0_i32 = arith.constant 0 : i32
    %c0_i32_0 = arith.constant 0 : i32
    return %arg0, %c0_i32 : i32, i32
  }
}

</mosaic_0001>

<llo_original>
// kernel: tpu_custom_call.1
$region0: #{tpu_custom_call.1}
  #allocation0 [shape = 'u32[]', space=smem, size = 0x4, offset = 0x4, fixed_abs, tag = 'smem constant byte address 0x4 - core index']
  #allocation1 [shape = 'u32[144,128]{1,0:T(1,128)}', space=vmem, size = 0x12000, scoped, tag = 'internal scratch']
  %s0 = inlined_call_operand.hbm [shape: bf16[16,32], index: 0, kind: input, shape index: {}]
  %s1 = inlined_call_operand.hbm [shape: bf16[32,128], index: 1, kind: input, shape index: {}]
  %s2 = inlined_call_operand.vmem [shape: f32[1,128], index: 2, kind: input, shape index: {}]
  %s3 = inlined_call_operand.hbm [shape: bf16[128,128], index: 3, kind: input, shape index: {}]
  %s4 = inlined_call_operand.vmem [shape: f32[1,128], index: 4, kind: input, shape index: {}]
  %s5 = inlined_call_operand.hbm [shape: f32[16,128], index: 5, kind: output, shape index: {}]
  %s6 = sld [smem:[#allocation0]]
  $region42: #{tpu_custom_call.1} parent=0
    _
  %s8 = ssub.s32 1, %s6
  %s9 = scalar_select 0, %s8, %s6
  $region1: #{tpu_custom_call.1} parent=0
    #allocation2 [shape = 'u8[4096]{0}', space=vmem, size = 0x1000, scoped, tag = 'input window, operand 0, single buffered']
    #allocation3 [shape = 's32[1]{0}', space=sflag, size = 0x4, scoped, tag = 'scoped memory for tpu_custom_call.1']
    #allocation4 [shape = 's32[1]{0}', space=sflag, size = 0x4, scoped, tag = 'scoped memory for tpu_custom_call.1']
    #allocation5 [shape = 'u8[8192]{0}', space=vmem, size = 0x2000, scoped, tag = 'input window, operand 1, single buffered']
    #allocation6 [shape = 's32[1]{0}', space=sflag, size = 0x4, scoped, tag = 'scoped memory for tpu_custom_call.1']
    #allocation7 [shape = 'u8[32768]{0}', space=vmem, size = 0x8000, scoped, tag = 'input window, operand 3, single buffered']
    #allocation8 [shape = 'u8[8192]{0}', space=vmem, size = 0x2000, scoped, tag = 'output window, operand 0, single buffered']
    %10 = vsyncpa [#allocation3], 0
    %11 = vsyncpa [#allocation6], 0
    %12 = vsyncpa [#allocation4], 0
    // Predicated region
    $region2: #{tpu_custom_call.1} parent=1 // pred_check
      _
    $region3: #{tpu_custom_call.1} parent=1 // pred_check_branch
      %14 = sbr.rel (0) target = $region5
    $region4: #{tpu_custom_call.1} parent=1 // pred_region
      %s16 = ssub.s32 128, 128
      %17 = vsyncadd [#allocation3], %s16
      %s18 = sshll.u32 [#allocation2], 4
      %s19 = int_to_ptr.vmem [resolvable:$true] %s18
      %24 = dma.hbm_to_vmem [thread:$0]  %s0, 128, %s19, [#allocation3], 64, 64, 4
    $region5: #{tpu_custom_call.1} parent=1 // pred_fallthru
      _
    // Predicated region
    $region6: #{tpu_custom_call.1} parent=1 // pred_check
      _
    $region7: #{tpu_custom_call.1} parent=1 // pred_check_branch
      %26 = sbr.rel (0) target = $region9
    $region8: #{tpu_custom_call.1} parent=1 // pred_region
      %s28 = ssub.s32 256, 256
      %29 = vsyncadd [#allocation6], %s28
      %s30 = sshll.u32 [#allocation5], 4
      %s31 = int_to_ptr.vmem [resolvable:$true] %s30
      %36 = dma.hbm_to_vmem [thread:$0]  %s1, 256, %s31, [#allocation6], 64, 64, 4
    $region9: #{tpu_custom_call.1} parent=1 // pred_fallthru
      _
    // Predicated region
    $region10: #{tpu_custom_call.1} parent=1 // pred_check
      _
    $region11: #{tpu_custom_call.1} parent=1 // pred_check_branch
      %38 = sbr.rel (0) target = $region13
    $region12: #{tpu_custom_call.1} parent=1 // pred_region
      _
    $region13: #{tpu_custom_call.1} parent=1 // pred_fallthru
      _
    // Predicated region
    $region14: #{tpu_custom_call.1} parent=1 // pred_check
      _
    $region15: #{tpu_custom_call.1} parent=1 // pred_check_branch
      %40 = sbr.rel (0) target = $region17
    $region16: #{tpu_custom_call.1} parent=1 // pred_region
      %s42 = ssub.s32 1024, 1024
      %43 = vsyncadd [#allocation6], %s42
      %s44 = sshll.u32 [#allocation7], 4
      %s45 = int_to_ptr.vmem [resolvable:$true] %s44
      %50 = dma.hbm_to_vmem [thread:$0]  %s3, 1024, %s45, [#allocation6], 64, 64, 4
    $region17: #{tpu_custom_call.1} parent=1 // pred_fallthru
      _
    // Predicated region
    $region18: #{tpu_custom_call.1} parent=1 // pred_check
      _
    $region19: #{tpu_custom_call.1} parent=1 // pred_check_branch
      %52 = sbr.rel (0) target = $region21
    $region20: #{tpu_custom_call.1} parent=1 // pred_region
      _
    $region21: #{tpu_custom_call.1} parent=1 // pred_fallthru
      _
    // Predicated region
    $region22: #{tpu_custom_call.1} parent=1 // pred_check
      _
    $region23: #{tpu_custom_call.1} parent=1 // pred_check_branch
      %54 = sbr.rel (0) target = $region25
    $region24: #{tpu_custom_call.1} parent=1 // pred_region
      %55 = dma.done [#allocation3], 128
    $region25: #{tpu_custom_call.1} parent=1 // pred_fallthru
      _
    // Predicated region
    $region26: #{tpu_custom_call.1} parent=1 // pred_check
      _
    $region27: #{tpu_custom_call.1} parent=1 // pred_check_branch
      %57 = sbr.rel (0) target = $region29
    $region28: #{tpu_custom_call.1} parent=1 // pred_region
      %58 = dma.done [#allocation6], 256
    $region29: #{tpu_custom_call.1} parent=1 // pred_fallthru
      _
    // Predicated region
    $region30: #{tpu_custom_call.1} parent=1 // pred_check
      _
    $region31: #{tpu_custom_call.1} parent=1 // pred_check_branch
      %60 = sbr.rel (0) target = $region33
    $region32: #{tpu_custom_call.1} parent=1 // pred_region
      %61 = dma.done [#allocation6], 1024
    $region33: #{tpu_custom_call.1} parent=1 // pred_fallthru
      _
    %v63 = vld [vmem:[#allocation2] sm:$0xf]
    %v64 = vld [vmem:[#allocation2 + $0x4] sm:$0xf]
    %v65 = vld [vmem:[#allocation5] sm:$0xf]
    %v66 = vld [vmem:[#allocation5 + $0x4] sm:$0xf]
    %v67 = vld [vmem:[#allocation5 + $0x8] sm:$0xf]
    %v68 = vld [vmem:[#allocation5 + $0xc] sm:$0xf]
    %v69 = vld [vmem:[%s2] sm:$0x1]
    %v71 = vlaneseq
    %v72 = vshrl.u32 %v71, 7
    %v73 = vsub.s32 0, %v72
    %v74 = vrot.slane %v69, %v73
    %v78 = vunpack.c.l.b16 %v63
    %v79 = vunpack.c.l.b16 %v64
    %v80 = vpack.c.b16 %v79, %v78
    %v85 = vunpack.c.l.b16 %v65
    %v86 = vunpack.c.l.b16 %v66
    %v87 = vunpack.c.l.b16 %v67
    %v88 = vunpack.c.l.b16 %v68
    %v89 = vpack.c.b16 %v86, %v85
    %v90 = vpack.c.b16 %v88, %v87
    %vm93 = vcmask 261120
    %v95 = vsel %vm93, %v80, 0
    %97 = vmatprep.subr.bf16.mxu0 0
    %98 = vmatpush1.bf16.msra.mxu0 %v89
    %99 = vmatprep.subr.bf16.mxu0 0
    %100 = vmatpush1.bf16.msra.mxu0 %v90
    %101 = vmatprep.subr.bf16.mxu0 0
    %102 = vmatpush1.bf16.msra.mxu0 0
    %103 = vmatprep.subr.bf16.mxu0 0
    %104 = vmatpush1.bf16.msra.mxu0 0
    %105 = vmatprep.subr.bf16.mxu0 0
    %106 = vmatpush1.bf16.msra.mxu0 0
    %107 = vmatprep.subr.bf16.mxu0 0
    %108 = vmatpush1.bf16.msra.mxu0 0
    %109 = vmatprep.subr.bf16.mxu0 0
    %110 = vmatpush1.bf16.msra.mxu0 0
    %111 = vmatprep.subr.bf16.mxu0 0
    %112 = vmatpush1.bf16.msra.mxu0 0
    %113 = vmatprep.subr.bf16.mxu0 0
    %114 = vmatpush1.bf16.msra.mxu0 0
    %115 = vmatprep.subr.bf16.mxu0 0
    %116 = vmatpush1.bf16.msra.mxu0 0
    %117 = vmatprep.subr.bf16.mxu0 0
    %118 = vmatpush1.bf16.msra.mxu0 0
    %119 = vmatprep.subr.bf16.mxu0 0
    %120 = vmatpush1.bf16.msra.mxu0 0
    %121 = vmatprep.subr.bf16.mxu0 0
    %122 = vmatpush1.bf16.msra.mxu0 0
    %123 = vmatprep.subr.bf16.mxu0 0
    %124 = vmatpush1.bf16.msra.mxu0 0
    %125 = vmatprep.subr.bf16.mxu0 0
    %126 = vmatpush1.bf16.msra.mxu0 0
    %127 = vmatprep.subr.bf16.mxu0 0
    %128 = vmatpush1.bf16.msra.mxu0 0
    %129 = vmatprep.mubr.bf16.mxu0 0
    %130 = vmatmul.mubr.bf16.gmra.mrb[0].mxu0 %v95
    %v131 = vpop.f32.mrb[0].mxu0
    %v132 = vadd.f32 %v74, %v131
    %v133 = vpop.f32.mrb[0].mxu0
    %v134 = vpop.f32.mrb[0].mxu0
    %v135 = vadd.f32 %v74, %v134
    %v136 = vpop.f32.mrb[0].mxu0
    %137 = vdwg.mxu0
    %v138 = vmul.f32 %v132, %v132
    %v139 = vmul.f32 %v135, %v135
    %v140 = vmul.f32 %v132, %v138
    %v141 = vmul.f32 %v135, %v139
    %v142 = vmul.f32 %v140, 0.044715
    %v143 = vmul.f32 %v141, 0.044715
    %v144 = vadd.f32 %v132, %v142
    %v145 = vadd.f32 %v135, %v143
    %v146 = vmul.f32 %v144, 0.7978846
    %v147 = vmul.f32 %v145, 0.7978846
    %v148 = vtanh.pop %v146
    %v149 = vtanh.pop %v147
    %v150 = vadd.f32 %v148, 1.0
    %v151 = vadd.f32 %v149, 1.0
    %v152 = vmul.f32 %v150, 0.5
    %v153 = vmul.f32 %v151, 0.5
    %v154 = vmul.f32 %v132, %v152
    %v155 = vmul.f32 %v135, %v153
    %v156 = vpack.c.bf16 %v155, %v154
    %v157 = vld [vmem:[#allocation7] sm:$0xf]
    %v158 = vld [vmem:[#allocation7 + $0x4] sm:$0xf]
    %v159 = vld [vmem:[#allocation7 + $0x8] sm:$0xf]
    %v160 = vld [vmem:[#allocation7 + $0xc] sm:$0xf]
    %v161 = vld [vmem:[#allocation7 + $0x10] sm:$0xf]
    %v162 = vld [vmem:[#allocation7 + $0x14] sm:$0xf]
    %v163 = vld [vmem:[#allocation7 + $0x18] sm:$0xf]
    %v164 = vld [vmem:[#allocation7 + $0x1c] sm:$0xf]
    %v165 = vld [vmem:[#allocation7 + $0x20] sm:$0xf]
    %v166 = vld [vmem:[#allocation7 + $0x24] sm:$0xf]
    %v167 = vld [vmem:[#allocation7 + $0x28] sm:$0xf]
    %v168 = vld [vmem:[#allocation7 + $0x2c] sm:$0xf]
    %v169 = vld [vmem:[#allocation7 + $0x30] sm:$0xf]
    %v170 = vld [vmem:[#allocation7 + $0x34] sm:$0xf]
    %v171 = vld [vmem:[#allocation7 + $0x38] sm:$0xf]
    %v172 = vld [vmem:[#allocation7 + $0x3c] sm:$0xf]
    %v173 = vld [vmem:[%s4] sm:$0x1]
    %v175 = vlaneseq
    %v176 = vshrl.u32 %v175, 7
    %v177 = vsub.s32 0, %v176
    %v178 = vrot.slane %v173, %v177
    %v196 = vunpack.c.l.b16 %v157
    %v197 = vunpack.c.l.b16 %v158
    %v198 = vunpack.c.l.b16 %v159
    %v199 = vunpack.c.l.b16 %v160
    %v200 = vunpack.c.l.b16 %v161
    %v201 = vunpack.c.l.b16 %v162
    %v202 = vunpack.c.l.b16 %v163
    %v203 = vunpack.c.l.b16 %v164
    %v204 = vunpack.c.l.b16 %v165
    %v205 = vunpack.c.l.b16 %v166
    %v206 = vunpack.c.l.b16 %v167
    %v207 = vunpack.c.l.b16 %v168
    %v208 = vunpack.c.l.b16 %v169
    %v209 = vunpack.c.l.b16 %v170
    %v210 = vunpack.c.l.b16 %v171
    %v211 = vunpack.c.l.b16 %v172
    %v212 = vpack.c.b16 %v197, %v196
    %v213 = vpack.c.b16 %v199, %v198
    %v214 = vpack.c.b16 %v201, %v200
    %v215 = vpack.c.b16 %v203, %v202
    %v216 = vpack.c.b16 %v205, %v204
    %v217 = vpack.c.b16 %v207, %v206
    %v218 = vpack.c.b16 %v209, %v208
    %v219 = vpack.c.b16 %v211, %v210
    %228 = vmatprep.subr.bf16.mxu0 0
    %229 = vmatpush1.bf16.msra.mxu0 %v212
    %230 = vmatprep.subr.bf16.mxu0 0
    %231 = vmatpush1.bf16.msra.mxu0 %v213
    %232 = vmatprep.subr.bf16.mxu0 0
    %233 = vmatpush1.bf16.msra.mxu0 %v214
    %234 = vmatprep.subr.bf16.mxu0 0
    %235 = vmatpush1.bf16.msra.mxu0 %v215
    %236 = vmatprep.subr.bf16.mxu0 0
    %237 = vmatpush1.bf16.msra.mxu0 %v216
    %238 = vmatprep.subr.bf16.mxu0 0
    %239 = vmatpush1.bf16.msra.mxu0 %v217
    %240 = vmatprep.subr.bf16.mxu0 0
    %241 = vmatpush1.bf16.msra.mxu0 %v218
    %242 = vmatprep.subr.bf16.mxu0 0
    %243 = vmatpush1.bf16.msra.mxu0 %v219
    %244 = vmatprep.subr.bf16.mxu0 0
    %245 = vmatpush1.bf16.msra.mxu0 0
    %246 = vmatprep.subr.bf16.mxu0 0
    %247 = vmatpush1.bf16.msra.mxu0 0
    %248 = vmatprep.subr.bf16.mxu0 0
    %249 = vmatpush1.bf16.msra.mxu0 0
    %250 = vmatprep.subr.bf16.mxu0 0
    %251 = vmatpush1.bf16.msra.mxu0 0
    %252 = vmatprep.subr.bf16.mxu0 0
    %253 = vmatpush1.bf16.msra.mxu0 0
    %254 = vmatprep.subr.bf16.mxu0 0
    %255 = vmatpush1.bf16.msra.mxu0 0
    %256 = vmatprep.subr.bf16.mxu0 0
    %257 = vmatpush1.bf16.msra.mxu0 0
    %258 = vmatprep.subr.bf16.mxu0 0
    %259 = vmatpush1.bf16.msra.mxu0 0
    %260 = vmatprep.mubr.bf16.mxu0 0
    %261 = vmatmul.mubr.bf16.gmra.mrb[0].mxu0 %v156
    %v262 = vpop.f32.mrb[0].mxu0
    %v263 = vadd.f32 %v178, %v262
    %v264 = vpop.f32.mrb[0].mxu0
    %v265 = vpop.f32.mrb[0].mxu0
    %v266 = vadd.f32 %v178, %v265
    %v267 = vpop.f32.mrb[0].mxu0
    %268 = vdwg.mxu0
    %269 = vst [vmem:[#allocation8] sm:$0xff] %v263
    %270 = vst [vmem:[#allocation8 + $0x8] sm:$0xff] %v266
    // Predicated region
    $region34: #{tpu_custom_call.1} parent=1 // pred_check
      _
    $region35: #{tpu_custom_call.1} parent=1 // pred_check_branch
      %272 = sbr.rel (0) target = $region37
    $region36: #{tpu_custom_call.1} parent=1 // pred_region
      %s274 = ssub.s32 256, 256
      %275 = vsyncadd [#allocation4], %s274
      %s276 = sshll.u32 [#allocation8], 4
      %s277 = int_to_ptr.vmem [resolvable:$true] %s276
      %282 = dma.vmem_to_hbm [thread:$0]  %s277, 256, %s5, [#allocation4], 128, 128, 8
    $region37: #{tpu_custom_call.1} parent=1 // pred_fallthru
      _
    // Predicated region
    $region38: #{tpu_custom_call.1} parent=1 // pred_check
      _
    $region39: #{tpu_custom_call.1} parent=1 // pred_check_branch
      %284 = sbr.rel (0) target = $region41
    $region40: #{tpu_custom_call.1} parent=1 // pred_region
      %285 = dma.done [#allocation4], 256
    $region41: #{tpu_custom_call.1} parent=1 // pred_fallthru
      _
    %286 = vsyncpa [#allocation3], 1
    %287 = vsyncpa [#allocation6], 1
    %288 = vsyncpa [#allocation4], 1

</llo_original>
